<compile_context>
chip_gen: v5e
topology: v5e:2x2
jax: 0.10.0
libtpu: 0.0.40
codegen_flags: <defaults>
</compile_context>

<pallas_src>
import functools

import jax
import jax.numpy as jnp
from jax.experimental import pallas as pl
from jax.experimental.pallas import tpu as pltpu


# ---------------------------------------------------------------------------
# Static (epoch-dependent) scalar schedule, mirroring the PyTorch module.
# ---------------------------------------------------------------------------
def _schedule(epoch):
    warmup_epochs = 3
    if epoch < warmup_epochs:
        boost_factor = 10.0
    else:
        boost_factor = max(3.0, 10.0 * (0.7 ** (epoch - warmup_epochs)))
    if epoch < warmup_epochs:
        coord_scale = 2.0
    else:
        coord_scale = max(1.0, 2.0 * (0.85 ** (epoch - warmup_epochs)))
    if epoch < 5:
        class_weight = 0.5
    elif epoch < 10:
        class_weight = 0.5 + ((epoch - 5) / 5.0) * (1.0 - 0.5)
    else:
        class_weight = 1.0
    return dict(
        boost_factor=boost_factor,
        coord_scale=coord_scale,
        class_weight=class_weight,
        noobj_target=0.05 if epoch < warmup_epochs else 0.0,
        use_bce=epoch < 10,
        apply_iou_boost=epoch < 5,
        iou_boost=0.5 if epoch == 0 else 0.5 - epoch * 0.05,
        use_hard_mining=epoch >= 5,   # and self._use_hard_examples_mining
        conf_threshold=0.3,
    )


def _round_up(a, m):
    return ((a + m - 1) // m) * m


def _cdiv(a, b):
    return (a + b - 1) // b


def _choose_tile(M, cap=16384):
    """Lane tile (cells per grid step).

    Small M -> single tile (block == full array in the lane dims).
    Large M -> tile is a multiple of 1024 (so TM//128 is a multiple of 8 and
    the (TM//128, 128) block obeys the (8,128) rule) and the number of tiles
    is even and >= 2 so v7x can shard the "parallel" grid across both cores.
    """
    if M <= 1024:
        return _round_up(max(M, 1), 128)
    n_tiles = max(2, 2 * ((_cdiv(M, cap) + 1) // 2))      # even tile count
    return min(cap, _round_up(_cdiv(M, n_tiles), 1024))


# ---------------------------------------------------------------------------
# Pallas kernel factory
# ---------------------------------------------------------------------------
def _make_yolo_loss_kernel(S, B, epoch, M, TM):
    cfg = _schedule(epoch)
    C = 5 * B + 20
    G = TM // 128
    S_f = float(S)
    need_tail_mask = (M % TM) != 0

    def xywh2xyxy(x, y, w, h):
        # exactly mirrors YoloLoss.xywh2xyxy on (G, 128) tiles
        x = x / S_f
        y = y / S_f
        w = jnp.maximum(w, 1e-10)
        h = jnp.maximum(h, 1e-10)
        x1 = jnp.clip(x - 0.5 * w, 0.0, 1.0)
        y1 = jnp.clip(y - 0.5 * h, 0.0, 1.0)
        x2 = jnp.clip(x + 0.5 * w, 0.0, 1.0)
        y2 = jnp.clip(y + 0.5 * h, 0.0, 1.0)
        return x1, y1, x2, y2

    # Row layout of the concatenated input (first axis of the block):
    #   0 .. C-1   : pred  (B boxes of [x,y,w,h,conf] then 20 classes)
    #   C .. C+3   : target box [x,y,w,h]
    #   C+4 .. C+23: target classes
    #   C+24       : object mask
    def kernel(data_ref, out_ref):
        obj = data_ref[C + 24]                                 # (G, 128)

        if need_tail_mask:
            sub = jax.lax.broadcasted_iota(jnp.int32, (G, 128), 0)
            lane = jax.lax.broadcasted_iota(jnp.int32, (G, 128), 1)
            col = pl.program_id(0) * TM + sub * 128 + lane
            valid = (col < M).astype(jnp.float32)
            no_obj = (1.0 - obj) * valid       # padded tail cells contribute 0
        else:
            no_obj = 1.0 - obj

        # ---------------- class prediction loss ----------------
        pcls = data_ref[pl.ds(5 * B, 20)]                      # (20, G, 128)
        tcls = data_ref[pl.ds(C + 4, 20)]                      # (20, G, 128)
        if cfg["use_bce"]:
            p = jnp.clip(pcls, 1e-7, 1.0 - 1e-7)
            per = -(tcls * jnp.log(p) + (1.0 - tcls) * jnp.log(1.0 - p))
        else:
            per = (pcls - tcls) ** 2
        # reduce over the class axis first, then one obj-masked reduction
        cls_loss = jnp.sum(jnp.sum(per, axis=0) * obj) * cfg["class_weight"]

        # -------- no-object confidence loss (fused over B, one reduction) --------
        noobj_res = (data_ref[4] - cfg["noobj_target"]) ** 2
        for b in range(1, B):
            noobj_res = noobj_res + (data_ref[5 * b + 4] - cfg["noobj_target"]) ** 2
        noobj_loss = jnp.sum(noobj_res * no_obj)

        # ---------------- best-IoU box selection (per cell) ----------------
        tx, ty = data_ref[C + 0], data_ref[C + 1]
        tw_raw, th_raw = data_ref[C + 2], data_ref[C + 3]
        tx1, ty1, tx2, ty2 = xywh2xyxy(tx, ty, tw_raw, th_raw)
        t_area = (tx2 - tx1) * (ty2 - ty1)                     # (G, 128)

        best_iou = None
        best = None
        for b in range(B):
            bx, by = data_ref[5 * b + 0], data_ref[5 * b + 1]
            bw, bh = data_ref[5 * b + 2], data_ref[5 * b + 3]
            bc = data_ref[5 * b + 4]
            px1, py1, px2, py2 = xywh2xyxy(bx, by, bw, bh)
            p_area = (px2 - px1) * (py2 - py1)
            iw = jnp.maximum(jnp.minimum(px2, tx2) - jnp.maximum(px1, tx1), 0.0)
            ih = jnp.maximum(jnp.minimum(py2, ty2) - jnp.maximum(py1, ty1), 0.0)
            inter = iw * ih
            # exact divide keeps the best-box argmax faithful near ties
            iou = inter / (p_area + t_area - inter + 1e-10)
            if best_iou is None:
                best_iou = iou
                best = (bx, by, bw, bh, bc)
            else:
                better = iou > best_iou          # strict > : first box wins ties
                best_iou = jnp.where(better, iou, best_iou)
                best = tuple(jnp.where(better, new, old)
                             for new, old in zip((bx, by, bw, bh, bc), best))
        bx, by, bw, bh, bc = best

        if cfg["apply_iou_boost"]:
            best_iou = jnp.minimum(best_iou + cfg["iou_boost"], 0.95)

        # ------- regression loss:  (sqrt a - sqrt b)^2 = a + b - 2 sqrt(ab) -------
        pw = jnp.abs(bw) + 1e-6
        ph = jnp.abs(bh) + 1e-6
        tw = jnp.abs(tw_raw) + 1e-6
        th = jnp.abs(th_raw) + 1e-6
        res = ((bx - tx) ** 2 + (by - ty) ** 2
               + pw + tw - 2.0 * jnp.sqrt(pw * tw)
               + ph + th - 2.0 * jnp.sqrt(ph * th))
        reg_loss = jnp.sum(res * obj) * cfg["coord_scale"]

        # ---------------- containing-object confidence loss ----------------
        contain = (bc - best_iou) ** 2
        if cfg["use_hard_mining"]:
            diff = jnp.abs(bc - best_iou)
            contain = jnp.where(diff > cfg["conf_threshold"], contain * 2.0, contain)
        contain_loss = jnp.sum(contain * obj) * cfg["boost_factor"]

        num_obj = jnp.sum(obj)

        # Lane-dense per-tile partial sums: sublane r of the (1, 8, 128) output
        # block carries partial sum r (rows 5..7 are zero padding).
        row = jax.lax.broadcasted_iota(jnp.int32, (1, 8, 128), 1)
        out_ref[...] = (jnp.where(row == 0, cls_loss, 0.0)
                        + jnp.where(row == 1, noobj_loss, 0.0)
                        + jnp.where(row == 2, reg_loss, 0.0)
                        + jnp.where(row == 3, contain_loss, 0.0)
                        + jnp.where(row == 4, num_obj, 0.0))

    return kernel


# ---------------------------------------------------------------------------
# Wrapper (single fused layout pass, M-tiling, final scaling / no-object branch)
# ---------------------------------------------------------------------------
@functools.partial(jax.jit, static_argnames=("S", "B", "l_coord", "l_noobj", "epoch"))
def yolo_loss(pred_tensor, target_boxes, target_cls, has_object_map,
              *, S, B, l_coord, l_noobj, epoch=0):
    N = pred_tensor.shape[0]
    C = B * 5 + 20
    M = N * S * S
    ROWS = C + 25                 # pred | tbox(4) | tcls(20) | obj(1)

    TM = _choose_tile(M)
    M_pad = _round_up(M, TM)
    num_tiles = M_pad // TM
    G = TM // 128

    # One fused pass: concat per-cell features, transpose to feature-major,
    # zero-pad the ragged tail and (free metadata) reshape so the kernel sees
    # full-occupancy (G, 128) vreg tiles per feature row.
    data = jnp.concatenate(
        [pred_tensor.reshape(M, C).astype(jnp.float32),
         target_boxes.reshape(M, 4).astype(jnp.float32),
         target_cls.reshape(M, 20).astype(jnp.float32),
         has_object_map.reshape(M, 1).astype(jnp.float32)],
        axis=1)                                          # (M, ROWS)
    data = data.T                                        # (ROWS, M)
    if M_pad != M:
        data = jnp.pad(data, ((0, 0), (0, M_pad - M)))   # padded cells: all zero
    data = data.reshape(ROWS, M_pad // 128, 128)

    kernel = _make_yolo_loss_kernel(S, B, epoch, M, TM)

    block_bytes = ROWS * TM * 4
    vmem_limit = int(min(96 << 20, 2 * block_bytes + (24 << 20)))
    bytes_in = ROWS * 4 * M_pad
    n_transc = 44 if epoch < 10 else 4

    raw = pl.pallas_call(
        kernel,
        out_shape=jax.ShapeDtypeStruct((num_tiles, 8, 128), jnp.float32),
        grid=(num_tiles,),
        in_specs=[pl.BlockSpec((ROWS, G, 128), lambda i: (0, i, 0))],
        out_specs=pl.BlockSpec((1, 8, 128), lambda i: (i, 0, 0)),
        compiler_params=pltpu.CompilerParams(
            dimension_semantics=("parallel",),
            vmem_limit_bytes=vmem_limit),
        cost_estimate=pl.CostEstimate(
            flops=260 * M_pad,
            transcendentals=n_transc * M_pad,
            bytes_accessed=bytes_in + num_tiles * 8 * 128 * 4),
    )(data)

    # All 128 lanes of a row are identical; take lane 0 and sum over tiles.
    sums = jnp.sum(raw[:, :, 0], axis=0)                 # (8,)
    cls_raw, noobj_raw, reg_raw, contain_raw, num_obj = (
        sums[0], sums[1], sums[2], sums[3], sums[4])

    batch = jnp.float32(N)
    has_obj = num_obj > 0

    # Mirrors the PyTorch early-return branch when no cell has an object:
    #   reg = contain = 0, no_obj is NOT scaled by l_noobj.
    reg_loss = jnp.where(has_obj, (l_coord * reg_raw) / batch, 0.0)
    contain_loss = jnp.where(has_obj, contain_raw / batch, 0.0)
    no_obj_loss = jnp.where(has_obj, (l_noobj * noobj_raw) / batch, noobj_raw / batch)
    cls_loss = cls_raw / batch
    total_loss = reg_loss + contain_loss + no_obj_loss + cls_loss

    return {
        "total_loss": total_loss,
        "reg_loss": reg_loss,
        "containing_obj_loss": contain_loss,
        "no_obj_loss": no_obj_loss,
        "cls_loss": cls_loss,
    }


# ---------------------------------------------------------------------------
# Main
# ---------------------------------------------------------------------------
if __name__ == "__main__":
    S, B = 7, 2
    l_coord, l_noobj = 5.0, 0.5
    N = 2

    key = jax.random.PRNGKey(0)
    k1, k2, k3, k4 = jax.random.split(key, 4)

    pred_tensor = jax.random.uniform(k1, (N, S, S, B * 5 + 20), dtype=jnp.float32)
    target_boxes = jax.random.uniform(k2, (N, S, S, 4), dtype=jnp.float32)
    # center coords in [0, S], w/h in (0, 1)
    target_boxes = target_boxes.at[..., :2].multiply(float(S))
    target_cls = (jax.random.uniform(k3, (N, S, S, 20)) > 0.9).astype(jnp.float32)
    has_object_map = jax.random.uniform(k4, (N, S, S)) > 0.7

    out = yolo_loss(pred_tensor, target_boxes, target_cls, has_object_map,
                    S=S, B=B, l_coord=l_coord, l_noobj=l_noobj, epoch=0)
    out = jax.block_until_ready(out)

    assert all(bool(jnp.isfinite(v)) for v in out.values()), "non-finite loss"
    print("KERNEL_OK")
</pallas_src>

<mosaic_0001>
module attributes {stable_mosaic.version = 11 : i64} {
  func.func @kernel(%arg0: i32, %arg1: memref<55x1x128xf32, #tpu.memory_space<vmem>>, %arg2: memref<1x8x128xf32, #tpu.memory_space<vmem>>) attributes {dimension_semantics = [#tpu.dimension_semantics<parallel>], iteration_bounds = array<i64: 1>, scalar_prefetch = 0 : i64, scratch_operands = 0 : i64, tpu.core_type = #tpu.core_type<tc>, window_params = [{transform_indices = @transform_0, window_bounds = array<i64: 55, 1, 128>}, {transform_indices = @transform_1, window_bounds = array<i64: 1, 8, 128>}]} {
    %c54 = arith.constant 54 : index
    %c0 = arith.constant 0 : index
    %c0_0 = arith.constant 0 : index
    %0 = vector.load %arg1[%c54, %c0, %c0_0] : memref<55x1x128xf32, #tpu.memory_space<vmem>>, vector<1x1x128xf32>
    %1 = vector.shape_cast %0 : vector<1x1x128xf32> to vector<1x128xf32>
    %2 = tpu.iota {dimensions = array<i32: 0>} : vector<1x128xi32>
    %3 = tpu.iota {dimensions = array<i32: 1>} : vector<1x128xi32>
    %c128_i32 = arith.constant 128 : i32
    %4 = arith.muli %arg0, %c128_i32 : i32
    %c128_i32_1 = arith.constant 128 : i32
    %5 = vector.broadcast %c128_i32_1 : i32 to vector<1x128xi32>
    %6 = arith.muli %2, %5 : vector<1x128xi32>
    %7 = vector.broadcast %4 : i32 to vector<1x128xi32>
    %8 = arith.addi %7, %6 : vector<1x128xi32>
    %9 = arith.addi %8, %3 : vector<1x128xi32>
    %c98_i32 = arith.constant 98 : i32
    %10 = vector.broadcast %c98_i32 : i32 to vector<1x128xi32>
    %11 = arith.cmpi slt, %9, %10 : vector<1x128xi32>
    %12 = arith.extui %11 : vector<1x128xi1> to vector<1x128xi32>
    %13 = arith.sitofp %12 : vector<1x128xi32> to vector<1x128xf32>
    %cst = arith.constant 1.000000e+00 : f32
    %14 = vector.broadcast %cst : f32 to vector<1x128xf32>
    %15 = arith.subf %14, %1 : vector<1x128xf32>
    %16 = arith.mulf %15, %13 : vector<1x128xf32>
    %c10 = arith.constant 10 : index
    %c0_2 = arith.constant 0 : index
    %c0_3 = arith.constant 0 : index
    %17 = vector.load %arg1[%c10, %c0_2, %c0_3] : memref<55x1x128xf32, #tpu.memory_space<vmem>>, vector<20x1x128xf32>
    %c34 = arith.constant 34 : index
    %c0_4 = arith.constant 0 : index
    %c0_5 = arith.constant 0 : index
    %18 = vector.load %arg1[%c34, %c0_4, %c0_5] : memref<55x1x128xf32, #tpu.memory_space<vmem>>, vector<20x1x128xf32>
    %cst_6 = arith.constant 1.000000e-07 : f32
    %cst_7 = arith.constant 0.99999988 : f32
    %19 = vector.broadcast %cst_6 : f32 to vector<20x1x128xf32>
    %20 = arith.maximumf %19, %17 : vector<20x1x128xf32>
    %21 = vector.broadcast %cst_7 : f32 to vector<20x1x128xf32>
    %22 = arith.minimumf %21, %20 : vector<20x1x128xf32>
    %23 = math.log %22 : vector<20x1x128xf32>
    %24 = arith.mulf %18, %23 : vector<20x1x128xf32>
    %cst_8 = arith.constant 1.000000e+00 : f32
    %25 = vector.broadcast %cst_8 : f32 to vector<20x1x128xf32>
    %26 = arith.subf %25, %18 : vector<20x1x128xf32>
    %cst_9 = arith.constant 1.000000e+00 : f32
    %27 = vector.broadcast %cst_9 : f32 to vector<20x1x128xf32>
    %28 = arith.subf %27, %22 : vector<20x1x128xf32>
    %29 = math.log %28 : vector<20x1x128xf32>
    %30 = arith.mulf %26, %29 : vector<20x1x128xf32>
    %31 = arith.addf %24, %30 : vector<20x1x128xf32>
    %cst_10 = arith.constant 0.000000e+00 : f32
    %32 = vector.broadcast %cst_10 : f32 to vector<20x1x128xf32>
    %33 = arith.subf %32, %31 : vector<20x1x128xf32>
    %cst_11 = arith.constant dense<0.000000e+00> : vector<1x128xf32>
    %34 = vector.multi_reduction <add>, %33, %cst_11 [0] : vector<20x1x128xf32> to vector<1x128xf32>
    %35 = arith.mulf %34, %1 : vector<1x128xf32>
    %36 = vector.shape_cast %35 : vector<1x128xf32> to vector<1x1x128xf32>
    %cst_12 = arith.constant dense<0.000000e+00> : vector<1xf32>
    %37 = vector.multi_reduction <add>, %36, %cst_12 [1, 2] : vector<1x1x128xf32> to vector<1xf32>
    %38 = vector.shape_cast %37 : vector<1xf32> to vector<1x1x1xf32>
    %39 = vector.extract %38[0, 0, 0] : f32 from vector<1x1x1xf32>
    %cst_13 = arith.constant 5.000000e-01 : f32
    %40 = arith.mulf %39, %cst_13 : f32
    %c4 = arith.constant 4 : index
    %c0_14 = arith.constant 0 : index
    %c0_15 = arith.constant 0 : index
    %41 = vector.load %arg1[%c4, %c0_14, %c0_15] : memref<55x1x128xf32, #tpu.memory_space<vmem>>, vector<1x1x128xf32>
    %42 = vector.shape_cast %41 : vector<1x1x128xf32> to vector<1x128xf32>
    %cst_16 = arith.constant 5.000000e-02 : f32
    %43 = vector.broadcast %cst_16 : f32 to vector<1x128xf32>
    %44 = arith.subf %42, %43 : vector<1x128xf32>
    %45 = arith.mulf %44, %44 : vector<1x128xf32>
    %c9 = arith.constant 9 : index
    %c0_17 = arith.constant 0 : index
    %c0_18 = arith.constant 0 : index
    %46 = vector.load %arg1[%c9, %c0_17, %c0_18] : memref<55x1x128xf32, #tpu.memory_space<vmem>>, vector<1x1x128xf32>
    %47 = vector.shape_cast %46 : vector<1x1x128xf32> to vector<1x128xf32>
    %cst_19 = arith.constant 5.000000e-02 : f32
    %48 = vector.broadcast %cst_19 : f32 to vector<1x128xf32>
    %49 = arith.subf %47, %48 : vector<1x128xf32>
    %50 = arith.mulf %49, %49 : vector<1x128xf32>
    %51 = arith.addf %45, %50 : vector<1x128xf32>
    %52 = arith.mulf %51, %16 : vector<1x128xf32>
    %53 = vector.shape_cast %52 : vector<1x128xf32> to vector<1x1x128xf32>
    %cst_20 = arith.constant dense<0.000000e+00> : vector<1xf32>
    %54 = vector.multi_reduction <add>, %53, %cst_20 [1, 2] : vector<1x1x128xf32> to vector<1xf32>
    %55 = vector.shape_cast %54 : vector<1xf32> to vector<1x1x1xf32>
    %56 = vector.extract %55[0, 0, 0] : f32 from vector<1x1x1xf32>
    %c30 = arith.constant 30 : index
    %c0_21 = arith.constant 0 : index
    %c0_22 = arith.constant 0 : index
    %57 = vector.load %arg1[%c30, %c0_21, %c0_22] : memref<55x1x128xf32, #tpu.memory_space<vmem>>, vector<1x1x128xf32>
    %58 = vector.shape_cast %57 : vector<1x1x128xf32> to vector<1x128xf32>
    %c31 = arith.constant 31 : index
    %c0_23 = arith.constant 0 : index
    %c0_24 = arith.constant 0 : index
    %59 = vector.load %arg1[%c31, %c0_23, %c0_24] : memref<55x1x128xf32, #tpu.memory_space<vmem>>, vector<1x1x128xf32>
    %60 = vector.shape_cast %59 : vector<1x1x128xf32> to vector<1x128xf32>
    %c32 = arith.constant 32 : index
    %c0_25 = arith.constant 0 : index
    %c0_26 = arith.constant 0 : index
    %61 = vector.load %arg1[%c32, %c0_25, %c0_26] : memref<55x1x128xf32, #tpu.memory_space<vmem>>, vector<1x1x128xf32>
    %62 = vector.shape_cast %61 : vector<1x1x128xf32> to vector<1x128xf32>
    %c33 = arith.constant 33 : index
    %c0_27 = arith.constant 0 : index
    %c0_28 = arith.constant 0 : index
    %63 = vector.load %arg1[%c33, %c0_27, %c0_28] : memref<55x1x128xf32, #tpu.memory_space<vmem>>, vector<1x1x128xf32>
    %64 = vector.shape_cast %63 : vector<1x1x128xf32> to vector<1x128xf32>
    %cst_29 = arith.constant 7.000000e+00 : f32
    %65 = vector.broadcast %cst_29 : f32 to vector<1x128xf32>
    %66 = arith.divf %58, %65 : vector<1x128xf32>
    %cst_30 = arith.constant 7.000000e+00 : f32
    %67 = vector.broadcast %cst_30 : f32 to vector<1x128xf32>
    %68 = arith.divf %60, %67 : vector<1x128xf32>
    %cst_31 = arith.constant 1.000000e-10 : f32
    %69 = vector.broadcast %cst_31 : f32 to vector<1x128xf32>
    %70 = arith.maximumf %62, %69 : vector<1x128xf32>
    %cst_32 = arith.constant 1.000000e-10 : f32
    %71 = vector.broadcast %cst_32 : f32 to vector<1x128xf32>
    %72 = arith.maximumf %64, %71 : vector<1x128xf32>
    %cst_33 = arith.constant 5.000000e-01 : f32
    %73 = vector.broadcast %cst_33 : f32 to vector<1x128xf32>
    %74 = arith.mulf %73, %70 : vector<1x128xf32>
    %75 = arith.subf %66, %74 : vector<1x128xf32>
    %cst_34 = arith.constant 0.000000e+00 : f32
    %cst_35 = arith.constant 1.000000e+00 : f32
    %76 = vector.broadcast %cst_34 : f32 to vector<1x128xf32>
    %77 = arith.maximumf %76, %75 : vector<1x128xf32>
    %78 = vector.broadcast %cst_35 : f32 to vector<1x128xf32>
    %79 = arith.minimumf %78, %77 : vector<1x128xf32>
    %cst_36 = arith.constant 5.000000e-01 : f32
    %80 = vector.broadcast %cst_36 : f32 to vector<1x128xf32>
    %81 = arith.mulf %80, %72 : vector<1x128xf32>
    %82 = arith.subf %68, %81 : vector<1x128xf32>
    %cst_37 = arith.constant 0.000000e+00 : f32
    %cst_38 = arith.constant 1.000000e+00 : f32
    %83 = vector.broadcast %cst_37 : f32 to vector<1x128xf32>
    %84 = arith.maximumf %83, %82 : vector<1x128xf32>
    %85 = vector.broadcast %cst_38 : f32 to vector<1x128xf32>
    %86 = arith.minimumf %85, %84 : vector<1x128xf32>
    %cst_39 = arith.constant 5.000000e-01 : f32
    %87 = vector.broadcast %cst_39 : f32 to vector<1x128xf32>
    %88 = arith.mulf %87, %70 : vector<1x128xf32>
    %89 = arith.addf %66, %88 : vector<1x128xf32>
    %cst_40 = arith.constant 0.000000e+00 : f32
    %cst_41 = arith.constant 1.000000e+00 : f32
    %90 = vector.broadcast %cst_40 : f32 to vector<1x128xf32>
    %91 = arith.maximumf %90, %89 : vector<1x128xf32>
    %92 = vector.broadcast %cst_41 : f32 to vector<1x128xf32>
    %93 = arith.minimumf %92, %91 : vector<1x128xf32>
    %cst_42 = arith.constant 5.000000e-01 : f32
    %94 = vector.broadcast %cst_42 : f32 to vector<1x128xf32>
    %95 = arith.mulf %94, %72 : vector<1x128xf32>
    %96 = arith.addf %68, %95 : vector<1x128xf32>
    %cst_43 = arith.constant 0.000000e+00 : f32
    %cst_44 = arith.constant 1.000000e+00 : f32
    %97 = vector.broadcast %cst_43 : f32 to vector<1x128xf32>
    %98 = arith.maximumf %97, %96 : vector<1x128xf32>
    %99 = vector.broadcast %cst_44 : f32 to vector<1x128xf32>
    %100 = arith.minimumf %99, %98 : vector<1x128xf32>
    %101 = arith.subf %93, %79 : vector<1x128xf32>
    %102 = arith.subf %100, %86 : vector<1x128xf32>
    %103 = arith.mulf %101, %102 : vector<1x128xf32>
    %c0_45 = arith.constant 0 : index
    %c0_46 = arith.constant 0 : index
    %c0_47 = arith.constant 0 : index
    %104 = vector.load %arg1[%c0_45, %c0_46, %c0_47] : memref<55x1x128xf32, #tpu.memory_space<vmem>>, vector<1x1x128xf32>
    %105 = vector.shape_cast %104 : vector<1x1x128xf32> to vector<1x128xf32>
    %c1 = arith.constant 1 : index
    %c0_48 = arith.constant 0 : index
    %c0_49 = arith.constant 0 : index
    %106 = vector.load %arg1[%c1, %c0_48, %c0_49] : memref<55x1x128xf32, #tpu.memory_space<vmem>>, vector<1x1x128xf32>
    %107 = vector.shape_cast %106 : vector<1x1x128xf32> to vector<1x128xf32>
    %c2 = arith.constant 2 : index
    %c0_50 = arith.constant 0 : index
    %c0_51 = arith.constant 0 : index
    %108 = vector.load %arg1[%c2, %c0_50, %c0_51] : memref<55x1x128xf32, #tpu.memory_space<vmem>>, vector<1x1x128xf32>
    %109 = vector.shape_cast %108 : vector<1x1x128xf32> to vector<1x128xf32>
    %c3 = arith.constant 3 : index
    %c0_52 = arith.constant 0 : index
    %c0_53 = arith.constant 0 : index
    %110 = vector.load %arg1[%c3, %c0_52, %c0_53] : memref<55x1x128xf32, #tpu.memory_space<vmem>>, vector<1x1x128xf32>
    %111 = vector.shape_cast %110 : vector<1x1x128xf32> to vector<1x128xf32>
    %c4_54 = arith.constant 4 : index
    %c0_55 = arith.constant 0 : index
    %c0_56 = arith.constant 0 : index
    %112 = vector.load %arg1[%c4_54, %c0_55, %c0_56] : memref<55x1x128xf32, #tpu.memory_space<vmem>>, vector<1x1x128xf32>
    %113 = vector.shape_cast %112 : vector<1x1x128xf32> to vector<1x128xf32>
    %cst_57 = arith.constant 7.000000e+00 : f32
    %114 = vector.broadcast %cst_57 : f32 to vector<1x128xf32>
    %115 = arith.divf %105, %114 : vector<1x128xf32>
    %cst_58 = arith.constant 7.000000e+00 : f32
    %116 = vector.broadcast %cst_58 : f32 to vector<1x128xf32>
    %117 = arith.divf %107, %116 : vector<1x128xf32>
    %cst_59 = arith.constant 1.000000e-10 : f32
    %118 = vector.broadcast %cst_59 : f32 to vector<1x128xf32>
    %119 = arith.maximumf %109, %118 : vector<1x128xf32>
    %cst_60 = arith.constant 1.000000e-10 : f32
    %120 = vector.broadcast %cst_60 : f32 to vector<1x128xf32>
    %121 = arith.maximumf %111, %120 : vector<1x128xf32>
    %cst_61 = arith.constant 5.000000e-01 : f32
    %122 = vector.broadcast %cst_61 : f32 to vector<1x128xf32>
    %123 = arith.mulf %122, %119 : vector<1x128xf32>
    %124 = arith.subf %115, %123 : vector<1x128xf32>
    %cst_62 = arith.constant 0.000000e+00 : f32
    %cst_63 = arith.constant 1.000000e+00 : f32
    %125 = vector.broadcast %cst_62 : f32 to vector<1x128xf32>
    %126 = arith.maximumf %125, %124 : vector<1x128xf32>
    %127 = vector.broadcast %cst_63 : f32 to vector<1x128xf32>
    %128 = arith.minimumf %127, %126 : vector<1x128xf32>
    %cst_64 = arith.constant 5.000000e-01 : f32
    %129 = vector.broadcast %cst_64 : f32 to vector<1x128xf32>
    %130 = arith.mulf %129, %121 : vector<1x128xf32>
    %131 = arith.subf %117, %130 : vector<1x128xf32>
    %cst_65 = arith.constant 0.000000e+00 : f32
    %cst_66 = arith.constant 1.000000e+00 : f32
    %132 = vector.broadcast %cst_65 : f32 to vector<1x128xf32>
    %133 = arith.maximumf %132, %131 : vector<1x128xf32>
    %134 = vector.broadcast %cst_66 : f32 to vector<1x128xf32>
    %135 = arith.minimumf %134, %133 : vector<1x128xf32>
    %cst_67 = arith.constant 5.000000e-01 : f32
    %136 = vector.broadcast %cst_67 : f32 to vector<1x128xf32>
    %137 = arith.mulf %136, %119 : vector<1x128xf32>
    %138 = arith.addf %115, %137 : vector<1x128xf32>
    %cst_68 = arith.constant 0.000000e+00 : f32
    %cst_69 = arith.constant 1.000000e+00 : f32
    %139 = vector.broadcast %cst_68 : f32 to vector<1x128xf32>
    %140 = arith.maximumf %139, %138 : vector<1x128xf32>
    %141 = vector.broadcast %cst_69 : f32 to vector<1x128xf32>
    %142 = arith.minimumf %141, %140 : vector<1x128xf32>
    %cst_70 = arith.constant 5.000000e-01 : f32
    %143 = vector.broadcast %cst_70 : f32 to vector<1x128xf32>
    %144 = arith.mulf %143, %121 : vector<1x128xf32>
    %145 = arith.addf %117, %144 : vector<1x128xf32>
    %cst_71 = arith.constant 0.000000e+00 : f32
    %cst_72 = arith.constant 1.000000e+00 : f32
    %146 = vector.broadcast %cst_71 : f32 to vector<1x128xf32>
    %147 = arith.maximumf %146, %145 : vector<1x128xf32>
    %148 = vector.broadcast %cst_72 : f32 to vector<1x128xf32>
    %149 = arith.minimumf %148, %147 : vector<1x128xf32>
    %150 = arith.subf %142, %128 : vector<1x128xf32>
    %151 = arith.subf %149, %135 : vector<1x128xf32>
    %152 = arith.mulf %150, %151 : vector<1x128xf32>
    %153 = arith.minimumf %142, %93 : vector<1x128xf32>
    %154 = arith.maximumf %128, %79 : vector<1x128xf32>
    %155 = arith.subf %153, %154 : vector<1x128xf32>
    %cst_73 = arith.constant 0.000000e+00 : f32
    %156 = vector.broadcast %cst_73 : f32 to vector<1x128xf32>
    %157 = arith.maximumf %155, %156 : vector<1x128xf32>
    %158 = arith.minimumf %149, %100 : vector<1x128xf32>
    %159 = arith.maximumf %135, %86 : vector<1x128xf32>
    %160 = arith.subf %158, %159 : vector<1x128xf32>
    %cst_74 = arith.constant 0.000000e+00 : f32
    %161 = vector.broadcast %cst_74 : f32 to vector<1x128xf32>
    %162 = arith.maximumf %160, %161 : vector<1x128xf32>
    %163 = arith.mulf %157, %162 : vector<1x128xf32>
    %164 = arith.addf %152, %103 : vector<1x128xf32>
    %165 = arith.subf %164, %163 : vector<1x128xf32>
    %cst_75 = arith.constant 1.000000e-10 : f32
    %166 = vector.broadcast %cst_75 : f32 to vector<1x128xf32>
    %167 = arith.addf %165, %166 : vector<1x128xf32>
    %168 = arith.divf %163, %167 : vector<1x128xf32>
    %c5 = arith.constant 5 : index
    %c0_76 = arith.constant 0 : index
    %c0_77 = arith.constant 0 : index
    %169 = vector.load %arg1[%c5, %c0_76, %c0_77] : memref<55x1x128xf32, #tpu.memory_space<vmem>>, vector<1x1x128xf32>
    %170 = vector.shape_cast %169 : vector<1x1x128xf32> to vector<1x128xf32>
    %c6 = arith.constant 6 : index
    %c0_78 = arith.constant 0 : index
    %c0_79 = arith.constant 0 : index
    %171 = vector.load %arg1[%c6, %c0_78, %c0_79] : memref<55x1x128xf32, #tpu.memory_space<vmem>>, vector<1x1x128xf32>
    %172 = vector.shape_cast %171 : vector<1x1x128xf32> to vector<1x128xf32>
    %c7 = arith.constant 7 : index
    %c0_80 = arith.constant 0 : index
    %c0_81 = arith.constant 0 : index
    %173 = vector.load %arg1[%c7, %c0_80, %c0_81] : memref<55x1x128xf32, #tpu.memory_space<vmem>>, vector<1x1x128xf32>
    %174 = vector.shape_cast %173 : vector<1x1x128xf32> to vector<1x128xf32>
    %c8 = arith.constant 8 : index
    %c0_82 = arith.constant 0 : index
    %c0_83 = arith.constant 0 : index
    %175 = vector.load %arg1[%c8, %c0_82, %c0_83] : memref<55x1x128xf32, #tpu.memory_space<vmem>>, vector<1x1x128xf32>
    %176 = vector.shape_cast %175 : vector<1x1x128xf32> to vector<1x128xf32>
    %c9_84 = arith.constant 9 : index
    %c0_85 = arith.constant 0 : index
    %c0_86 = arith.constant 0 : index
    %177 = vector.load %arg1[%c9_84, %c0_85, %c0_86] : memref<55x1x128xf32, #tpu.memory_space<vmem>>, vector<1x1x128xf32>
    %178 = vector.shape_cast %177 : vector<1x1x128xf32> to vector<1x128xf32>
    %cst_87 = arith.constant 7.000000e+00 : f32
    %179 = vector.broadcast %cst_87 : f32 to vector<1x128xf32>
    %180 = arith.divf %170, %179 : vector<1x128xf32>
    %cst_88 = arith.constant 7.000000e+00 : f32
    %181 = vector.broadcast %cst_88 : f32 to vector<1x128xf32>
    %182 = arith.divf %172, %181 : vector<1x128xf32>
    %cst_89 = arith.constant 1.000000e-10 : f32
    %183 = vector.broadcast %cst_89 : f32 to vector<1x128xf32>
    %184 = arith.maximumf %174, %183 : vector<1x128xf32>
    %cst_90 = arith.constant 1.000000e-10 : f32
    %185 = vector.broadcast %cst_90 : f32 to vector<1x128xf32>
    %186 = arith.maximumf %176, %185 : vector<1x128xf32>
    %cst_91 = arith.constant 5.000000e-01 : f32
    %187 = vector.broadcast %cst_91 : f32 to vector<1x128xf32>
    %188 = arith.mulf %187, %184 : vector<1x128xf32>
    %189 = arith.subf %180, %188 : vector<1x128xf32>
    %cst_92 = arith.constant 0.000000e+00 : f32
    %cst_93 = arith.constant 1.000000e+00 : f32
    %190 = vector.broadcast %cst_92 : f32 to vector<1x128xf32>
    %191 = arith.maximumf %190, %189 : vector<1x128xf32>
    %192 = vector.broadcast %cst_93 : f32 to vector<1x128xf32>
    %193 = arith.minimumf %192, %191 : vector<1x128xf32>
    %cst_94 = arith.constant 5.000000e-01 : f32
    %194 = vector.broadcast %cst_94 : f32 to vector<1x128xf32>
    %195 = arith.mulf %194, %186 : vector<1x128xf32>
    %196 = arith.subf %182, %195 : vector<1x128xf32>
    %cst_95 = arith.constant 0.000000e+00 : f32
    %cst_96 = arith.constant 1.000000e+00 : f32
    %197 = vector.broadcast %cst_95 : f32 to vector<1x128xf32>
    %198 = arith.maximumf %197, %196 : vector<1x128xf32>
    %199 = vector.broadcast %cst_96 : f32 to vector<1x128xf32>
    %200 = arith.minimumf %199, %198 : vector<1x128xf32>
    %cst_97 = arith.constant 5.000000e-01 : f32
    %201 = vector.broadcast %cst_97 : f32 to vector<1x128xf32>
    %202 = arith.mulf %201, %184 : vector<1x128xf32>
    %203 = arith.addf %180, %202 : vector<1x128xf32>
    %cst_98 = arith.constant 0.000000e+00 : f32
    %cst_99 = arith.constant 1.000000e+00 : f32
    %204 = vector.broadcast %cst_98 : f32 to vector<1x128xf32>
    %205 = arith.maximumf %204, %203 : vector<1x128xf32>
    %206 = vector.broadcast %cst_99 : f32 to vector<1x128xf32>
    %207 = arith.minimumf %206, %205 : vector<1x128xf32>
    %cst_100 = arith.constant 5.000000e-01 : f32
    %208 = vector.broadcast %cst_100 : f32 to vector<1x128xf32>
    %209 = arith.mulf %208, %186 : vector<1x128xf32>
    %210 = arith.addf %182, %209 : vector<1x128xf32>
    %cst_101 = arith.constant 0.000000e+00 : f32
    %cst_102 = arith.constant 1.000000e+00 : f32
    %211 = vector.broadcast %cst_101 : f32 to vector<1x128xf32>
    %212 = arith.maximumf %211, %210 : vector<1x128xf32>
    %213 = vector.broadcast %cst_102 : f32 to vector<1x128xf32>
    %214 = arith.minimumf %213, %212 : vector<1x128xf32>
    %215 = arith.subf %207, %193 : vector<1x128xf32>
    %216 = arith.subf %214, %200 : vector<1x128xf32>
    %217 = arith.mulf %215, %216 : vector<1x128xf32>
    %218 = arith.minimumf %207, %93 : vector<1x128xf32>
    %219 = arith.maximumf %193, %79 : vector<1x128xf32>
    %220 = arith.subf %218, %219 : vector<1x128xf32>
    %cst_103 = arith.constant 0.000000e+00 : f32
    %221 = vector.broadcast %cst_103 : f32 to vector<1x128xf32>
    %222 = arith.maximumf %220, %221 : vector<1x128xf32>
    %223 = arith.minimumf %214, %100 : vector<1x128xf32>
    %224 = arith.maximumf %200, %86 : vector<1x128xf32>
    %225 = arith.subf %223, %224 : vector<1x128xf32>
    %cst_104 = arith.constant 0.000000e+00 : f32
    %226 = vector.broadcast %cst_104 : f32 to vector<1x128xf32>
    %227 = arith.maximumf %225, %226 : vector<1x128xf32>
    %228 = arith.mulf %222, %227 : vector<1x128xf32>
    %229 = arith.addf %217, %103 : vector<1x128xf32>
    %230 = arith.subf %229, %228 : vector<1x128xf32>
    %cst_105 = arith.constant 1.000000e-10 : f32
    %231 = vector.broadcast %cst_105 : f32 to vector<1x128xf32>
    %232 = arith.addf %230, %231 : vector<1x128xf32>
    %233 = arith.divf %228, %232 : vector<1x128xf32>
    %234 = arith.cmpf ogt, %233, %168 : vector<1x128xf32>
    %235 = arith.select %234, %233, %168 : vector<1x128xi1>, vector<1x128xf32>
    %236 = arith.select %234, %170, %105 : vector<1x128xi1>, vector<1x128xf32>
    %237 = arith.select %234, %172, %107 : vector<1x128xi1>, vector<1x128xf32>
    %238 = arith.select %234, %174, %109 : vector<1x128xi1>, vector<1x128xf32>
    %239 = arith.select %234, %176, %111 : vector<1x128xi1>, vector<1x128xf32>
    %240 = arith.select %234, %178, %113 : vector<1x128xi1>, vector<1x128xf32>
    %cst_106 = arith.constant 5.000000e-01 : f32
    %241 = vector.broadcast %cst_106 : f32 to vector<1x128xf32>
    %242 = arith.addf %235, %241 : vector<1x128xf32>
    %cst_107 = arith.constant 0.949999988 : f32
    %243 = vector.broadcast %cst_107 : f32 to vector<1x128xf32>
    %244 = arith.minimumf %242, %243 : vector<1x128xf32>
    %245 = math.absf %238 : vector<1x128xf32>
    %cst_108 = arith.constant 9.99999997E-7 : f32
    %246 = vector.broadcast %cst_108 : f32 to vector<1x128xf32>
    %247 = arith.addf %245, %246 : vector<1x128xf32>
    %248 = math.absf %239 : vector<1x128xf32>
    %cst_109 = arith.constant 9.99999997E-7 : f32
    %249 = vector.broadcast %cst_109 : f32 to vector<1x128xf32>
    %250 = arith.addf %248, %249 : vector<1x128xf32>
    %251 = math.absf %62 : vector<1x128xf32>
    %cst_110 = arith.constant 9.99999997E-7 : f32
    %252 = vector.broadcast %cst_110 : f32 to vector<1x128xf32>
    %253 = arith.addf %251, %252 : vector<1x128xf32>
    %254 = math.absf %64 : vector<1x128xf32>
    %cst_111 = arith.constant 9.99999997E-7 : f32
    %255 = vector.broadcast %cst_111 : f32 to vector<1x128xf32>
    %256 = arith.addf %254, %255 : vector<1x128xf32>
    %257 = arith.subf %236, %58 : vector<1x128xf32>
    %258 = arith.mulf %257, %257 : vector<1x128xf32>
    %259 = arith.subf %237, %60 : vector<1x128xf32>
    %260 = arith.mulf %259, %259 : vector<1x128xf32>
    %261 = arith.addf %258, %260 : vector<1x128xf32>
    %262 = arith.addf %261, %247 : vector<1x128xf32>
    %263 = arith.addf %262, %253 : vector<1x128xf32>
    %264 = arith.mulf %247, %253 : vector<1x128xf32>
    %265 = math.sqrt %264 : vector<1x128xf32>
    %cst_112 = arith.constant 2.000000e+00 : f32
    %266 = vector.broadcast %cst_112 : f32 to vector<1x128xf32>
    %267 = arith.mulf %266, %265 : vector<1x128xf32>
    %268 = arith.subf %263, %267 : vector<1x128xf32>
    %269 = arith.addf %268, %250 : vector<1x128xf32>
    %270 = arith.addf %269, %256 : vector<1x128xf32>
    %271 = arith.mulf %250, %256 : vector<1x128xf32>
    %272 = math.sqrt %271 : vector<1x128xf32>
    %cst_113 = arith.constant 2.000000e+00 : f32
    %273 = vector.broadcast %cst_113 : f32 to vector<1x128xf32>
    %274 = arith.mulf %273, %272 : vector<1x128xf32>
    %275 = arith.subf %270, %274 : vector<1x128xf32>
    %276 = arith.mulf %275, %1 : vector<1x128xf32>
    %277 = vector.shape_cast %276 : vector<1x128xf32> to vector<1x1x128xf32>
    %cst_114 = arith.constant dense<0.000000e+00> : vector<1xf32>
    %278 = vector.multi_reduction <add>, %277, %cst_114 [1, 2] : vector<1x1x128xf32> to vector<1xf32>
    %279 = vector.shape_cast %278 : vector<1xf32> to vector<1x1x1xf32>
    %280 = vector.extract %279[0, 0, 0] : f32 from vector<1x1x1xf32>
    %cst_115 = arith.constant 2.000000e+00 : f32
    %281 = arith.mulf %280, %cst_115 : f32
    %282 = arith.subf %240, %244 : vector<1x128xf32>
    %283 = arith.mulf %282, %282 : vector<1x128xf32>
    %284 = arith.mulf %283, %1 : vector<1x128xf32>
    %285 = vector.shape_cast %284 : vector<1x128xf32> to vector<1x1x128xf32>
    %cst_116 = arith.constant dense<0.000000e+00> : vector<1xf32>
    %286 = vector.multi_reduction <add>, %285, %cst_116 [1, 2] : vector<1x1x128xf32> to vector<1xf32>
    %287 = vector.shape_cast %286 : vector<1xf32> to vector<1x1x1xf32>
    %288 = vector.extract %287[0, 0, 0] : f32 from vector<1x1x1xf32>
    %cst_117 = arith.constant 1.000000e+01 : f32
    %289 = arith.mulf %288, %cst_117 : f32
    %290 = vector.shape_cast %1 : vector<1x128xf32> to vector<1x1x128xf32>
    %cst_118 = arith.constant dense<0.000000e+00> : vector<1xf32>
    %291 = vector.multi_reduction <add>, %290, %cst_118 [1, 2] : vector<1x1x128xf32> to vector<1xf32>
    %292 = vector.shape_cast %291 : vector<1xf32> to vector<1x1x1xf32>
    %293 = vector.extract %292[0, 0, 0] : f32 from vector<1x1x1xf32>
    %294 = tpu.iota {dimensions = array<i32: 1>} : vector<1x8x128xi32>
    %c0_i32 = arith.constant 0 : i32
    %295 = vector.broadcast %c0_i32 : i32 to vector<1x8x128xi32>
    %296 = arith.cmpi eq, %294, %295 : vector<1x8x128xi32>
    %cst_119 = arith.constant 0.000000e+00 : f32
    %297 = vector.broadcast %40 : f32 to vector<1x8x128xf32>
    %298 = vector.broadcast %cst_119 : f32 to vector<1x8x128xf32>
    %299 = arith.select %296, %297, %298 : vector<1x8x128xi1>, vector<1x8x128xf32>
    %c1_i32 = arith.constant 1 : i32
    %300 = vector.broadcast %c1_i32 : i32 to vector<1x8x128xi32>
    %301 = arith.cmpi eq, %294, %300 : vector<1x8x128xi32>
    %cst_120 = arith.constant 0.000000e+00 : f32
    %302 = vector.broadcast %56 : f32 to vector<1x8x128xf32>
    %303 = vector.broadcast %cst_120 : f32 to vector<1x8x128xf32>
    %304 = arith.select %301, %302, %303 : vector<1x8x128xi1>, vector<1x8x128xf32>
    %305 = arith.addf %299, %304 : vector<1x8x128xf32>
    %c2_i32 = arith.constant 2 : i32
    %306 = vector.broadcast %c2_i32 : i32 to vector<1x8x128xi32>
    %307 = arith.cmpi eq, %294, %306 : vector<1x8x128xi32>
    %cst_121 = arith.constant 0.000000e+00 : f32
    %308 = vector.broadcast %281 : f32 to vector<1x8x128xf32>
    %309 = vector.broadcast %cst_121 : f32 to vector<1x8x128xf32>
    %310 = arith.select %307, %308, %309 : vector<1x8x128xi1>, vector<1x8x128xf32>
    %311 = arith.addf %305, %310 : vector<1x8x128xf32>
    %c3_i32 = arith.constant 3 : i32
    %312 = vector.broadcast %c3_i32 : i32 to vector<1x8x128xi32>
    %313 = arith.cmpi eq, %294, %312 : vector<1x8x128xi32>
    %cst_122 = arith.constant 0.000000e+00 : f32
    %314 = vector.broadcast %289 : f32 to vector<1x8x128xf32>
    %315 = vector.broadcast %cst_122 : f32 to vector<1x8x128xf32>
    %316 = arith.select %313, %314, %315 : vector<1x8x128xi1>, vector<1x8x128xf32>
    %317 = arith.addf %311, %316 : vector<1x8x128xf32>
    %c4_i32 = arith.constant 4 : i32
    %318 = vector.broadcast %c4_i32 : i32 to vector<1x8x128xi32>
    %319 = arith.cmpi eq, %294, %318 : vector<1x8x128xi32>
    %cst_123 = arith.constant 0.000000e+00 : f32
    %320 = vector.broadcast %293 : f32 to vector<1x8x128xf32>
    %321 = vector.broadcast %cst_123 : f32 to vector<1x8x128xf32>
    %322 = arith.select %319, %320, %321 : vector<1x8x128xi1>, vector<1x8x128xf32>
    %323 = arith.addf %317, %322 : vector<1x8x128xf32>
    %c0_124 = arith.constant 0 : index
    %c0_125 = arith.constant 0 : index
    %c0_126 = arith.constant 0 : index
    %324 = vector.load %arg2[%c0_124, %c0_125, %c0_126] : memref<1x8x128xf32, #tpu.memory_space<vmem>>, vector<1x8x128xf32>
    tpu.vector_store %arg2[%c0_124, %c0_125, %c0_126], %323 {strides = array<i32>} : memref<1x8x128xf32, #tpu.memory_space<vmem>>, vector<1x8x128xf32>,
    return
  }
  func.func @transform_0(%arg0: i32) -> (i32, i32, i32) {
    %c0_i32 = arith.constant 0 : i32
    %c0_i32_0 = arith.constant 0 : i32
    %c0_i32_1 = arith.constant 0 : i32
    return %c0_i32, %arg0, %c0_i32_0 : i32, i32, i32
  }
  func.func @transform_1(%arg0: i32) -> (i32, i32, i32) {
    %c0_i32 = arith.constant 0 : i32
    %c0_i32_0 = arith.constant 0 : i32
    %c0_i32_1 = arith.constant 0 : i32
    return %arg0, %c0_i32, %c0_i32_0 : i32, i32, i32
  }
}

</mosaic_0001>

<llo_original>
// kernel: yolo_loss.1
$region0: #{yolo_loss.1}
  #allocation0 [shape = 'u32[]', space=smem, size = 0x4, offset = 0x4, fixed_abs, tag = 'smem constant byte address 0x4 - core index']
  #allocation1 [shape = 'u32[72,128]{1,0:T(1,128)}', space=vmem, size = 0x9000, scoped, tag = 'internal scratch']
  %s0 = inlined_call_operand.vmem [shape: f32[55,1,128], index: 0, kind: input, shape index: {}]
  %s1 = inlined_call_operand.vmem [shape: f32[1,8,128], index: 1, kind: output, shape index: {}]
  %s2 = sld [smem:[#allocation0]]
  $region14: #{yolo_loss.1} parent=0
    _
  %s4 = ssub.s32 1, %s2
  %s5 = scalar_select 0, %s4, %s2
  // Predicated region
  $region2: #{yolo_loss.1} parent=0 // pred_check
    _
  $region3: #{yolo_loss.1} parent=0 // pred_check_branch
    %7 = sbr.rel (0) target = $region5
  $region4: #{yolo_loss.1} parent=0 // pred_region
    _
  $region5: #{yolo_loss.1} parent=0 // pred_fallthru
    _
  %s8 = scalar_lea.vmem %s0, 54
  %v9 = vld [vmem:[%s8] sm:$0x1]
  %v10 = vlaneseq
  %v11 = vshrl.u32 %v10, 7
  %v12 = vlaneseq
  %v13 = vand.u32 %v12, 127
  %s14 = smul.u32 0, 128
  %v15 = vmul.u32 %v11, 128
  %v16 = vstv %s14
  %v17 = vadd.s32 %v16, %v15
  %v18 = vadd.s32 %v17, %v13
  %vm19 = vcmp.lt.s32.totalorder %v18, 98
  %v20 = vsel %vm19, 1, 0
  %v21 = vcvt.s32.f32 %v20
  %v22 = vsub.f32 1.0, %v9
  %v23 = vmul.f32 %v22, %v21
  %s24 = scalar_lea.vmem %s0, 10
  %v25 = vld [vmem:[%s24] sm:$0x1]
  %v26 = vld [vmem:[%s24 + $0x1] sm:$0x1]
  %v27 = vld [vmem:[%s24 + $0x2] sm:$0x1]
  %v28 = vld [vmem:[%s24 + $0x3] sm:$0x1]
  %v29 = vld [vmem:[%s24 + $0x4] sm:$0x1]
  %v30 = vld [vmem:[%s24 + $0x5] sm:$0x1]
  %v31 = vld [vmem:[%s24 + $0x6] sm:$0x1]
  %v32 = vld [vmem:[%s24 + $0x7] sm:$0x1]
  %v33 = vld [vmem:[%s24 + $0x8] sm:$0x1]
  %v34 = vld [vmem:[%s24 + $0x9] sm:$0x1]
  %v35 = vld [vmem:[%s24 + $0xa] sm:$0x1]
  %v36 = vld [vmem:[%s24 + $0xb] sm:$0x1]
  %v37 = vld [vmem:[%s24 + $0xc] sm:$0x1]
  %v38 = vld [vmem:[%s24 + $0xd] sm:$0x1]
  %v39 = vld [vmem:[%s24 + $0xe] sm:$0x1]
  %v40 = vld [vmem:[%s24 + $0xf] sm:$0x1]
  %v41 = vld [vmem:[%s24 + $0x10] sm:$0x1]
  %v42 = vld [vmem:[%s24 + $0x11] sm:$0x1]
  %v43 = vld [vmem:[%s24 + $0x12] sm:$0x1]
  %v44 = vld [vmem:[%s24 + $0x13] sm:$0x1]
  %s45 = scalar_lea.vmem %s0, 34
  %v46 = vld [vmem:[%s45] sm:$0x1]
  %v47 = vld [vmem:[%s45 + $0x1] sm:$0x1]
  %v48 = vld [vmem:[%s45 + $0x2] sm:$0x1]
  %v49 = vld [vmem:[%s45 + $0x3] sm:$0x1]
  %v50 = vld [vmem:[%s45 + $0x4] sm:$0x1]
  %v51 = vld [vmem:[%s45 + $0x5] sm:$0x1]
  %v52 = vld [vmem:[%s45 + $0x6] sm:$0x1]
  %v53 = vld [vmem:[%s45 + $0x7] sm:$0x1]
  %v54 = vld [vmem:[%s45 + $0x8] sm:$0x1]
  %v55 = vld [vmem:[%s45 + $0x9] sm:$0x1]
  %v56 = vld [vmem:[%s45 + $0xa] sm:$0x1]
  %v57 = vld [vmem:[%s45 + $0xb] sm:$0x1]
  %v58 = vld [vmem:[%s45 + $0xc] sm:$0x1]
  %v59 = vld [vmem:[%s45 + $0xd] sm:$0x1]
  %v60 = vld [vmem:[%s45 + $0xe] sm:$0x1]
  %v61 = vld [vmem:[%s45 + $0xf] sm:$0x1]
  %v62 = vld [vmem:[%s45 + $0x10] sm:$0x1]
  %v63 = vld [vmem:[%s45 + $0x11] sm:$0x1]
  %v64 = vld [vmem:[%s45 + $0x12] sm:$0x1]
  %v65 = vld [vmem:[%s45 + $0x13] sm:$0x1]
  %v66 = vmax.f32 %v25, 1e-07
  %v67 = vmax.f32 %v26, 1e-07
  %v68 = vmax.f32 %v27, 1e-07
  %v69 = vmax.f32 %v28, 1e-07
  %v70 = vmax.f32 %v29, 1e-07
  %v71 = vmax.f32 %v30, 1e-07
  %v72 = vmax.f32 %v31, 1e-07
  %v73 = vmax.f32 %v32, 1e-07
  %v74 = vmax.f32 %v33, 1e-07
  %v75 = vmax.f32 %v34, 1e-07
  %v76 = vmax.f32 %v35, 1e-07
  %v77 = vmax.f32 %v36, 1e-07
  %v78 = vmax.f32 %v37, 1e-07
  %v79 = vmax.f32 %v38, 1e-07
  %v80 = vmax.f32 %v39, 1e-07
  %v81 = vmax.f32 %v40, 1e-07
  %v82 = vmax.f32 %v41, 1e-07
  %v83 = vmax.f32 %v42, 1e-07
  %v84 = vmax.f32 %v43, 1e-07
  %v85 = vmax.f32 %v44, 1e-07
  %v86 = vmin.f32 %v66, 0.9999999
  %v87 = vmin.f32 %v67, 0.9999999
  %v88 = vmin.f32 %v68, 0.9999999
  %v89 = vmin.f32 %v69, 0.9999999
  %v90 = vmin.f32 %v70, 0.9999999
  %v91 = vmin.f32 %v71, 0.9999999
  %v92 = vmin.f32 %v72, 0.9999999
  %v93 = vmin.f32 %v73, 0.9999999
  %v94 = vmin.f32 %v74, 0.9999999
  %v95 = vmin.f32 %v75, 0.9999999
  %v96 = vmin.f32 %v76, 0.9999999
  %v97 = vmin.f32 %v77, 0.9999999
  %v98 = vmin.f32 %v78, 0.9999999
  %v99 = vmin.f32 %v79, 0.9999999
  %v100 = vmin.f32 %v80, 0.9999999
  %v101 = vmin.f32 %v81, 0.9999999
  %v102 = vmin.f32 %v82, 0.9999999
  %v103 = vmin.f32 %v83, 0.9999999
  %v104 = vmin.f32 %v84, 0.9999999
  %v105 = vmin.f32 %v85, 0.9999999
  %v106 = vlog2.pop %v86
  %v107 = vmul.f32 %v106, 0.6931472
  %v108 = vlog2.pop %v87
  %v109 = vmul.f32 %v108, 0.6931472
  %v110 = vlog2.pop %v88
  %v111 = vmul.f32 %v110, 0.6931472
  %v112 = vlog2.pop %v89
  %v113 = vmul.f32 %v112, 0.6931472
  %v114 = vlog2.pop %v90
  %v115 = vmul.f32 %v114, 0.6931472
  %v116 = vlog2.pop %v91
  %v117 = vmul.f32 %v116, 0.6931472
  %v118 = vlog2.pop %v92
  %v119 = vmul.f32 %v118, 0.6931472
  %v120 = vlog2.pop %v93
  %v121 = vmul.f32 %v120, 0.6931472
  %v122 = vlog2.pop %v94
  %v123 = vmul.f32 %v122, 0.6931472
  %v124 = vlog2.pop %v95
  %v125 = vmul.f32 %v124, 0.6931472
  %v126 = vlog2.pop %v96
  %v127 = vmul.f32 %v126, 0.6931472
  %v128 = vlog2.pop %v97
  %v129 = vmul.f32 %v128, 0.6931472
  %v130 = vlog2.pop %v98
  %v131 = vmul.f32 %v130, 0.6931472
  %v132 = vlog2.pop %v99
  %v133 = vmul.f32 %v132, 0.6931472
  %v134 = vlog2.pop %v100
  %v135 = vmul.f32 %v134, 0.6931472
  %v136 = vlog2.pop %v101
  %v137 = vmul.f32 %v136, 0.6931472
  %v138 = vlog2.pop %v102
  %v139 = vmul.f32 %v138, 0.6931472
  %v140 = vlog2.pop %v103
  %v141 = vmul.f32 %v140, 0.6931472
  %v142 = vlog2.pop %v104
  %v143 = vmul.f32 %v142, 0.6931472
  %v144 = vlog2.pop %v105
  %v145 = vmul.f32 %v144, 0.6931472
  %v146 = vmul.f32 %v46, %v107
  %v147 = vmul.f32 %v47, %v109
  %v148 = vmul.f32 %v48, %v111
  %v149 = vmul.f32 %v49, %v113
  %v150 = vmul.f32 %v50, %v115
  %v151 = vmul.f32 %v51, %v117
  %v152 = vmul.f32 %v52, %v119
  %v153 = vmul.f32 %v53, %v121
  %v154 = vmul.f32 %v54, %v123
  %v155 = vmul.f32 %v55, %v125
  %v156 = vmul.f32 %v56, %v127
  %v157 = vmul.f32 %v57, %v129
  %v158 = vmul.f32 %v58, %v131
  %v159 = vmul.f32 %v59, %v133
  %v160 = vmul.f32 %v60, %v135
  %v161 = vmul.f32 %v61, %v137
  %v162 = vmul.f32 %v62, %v139
  %v163 = vmul.f32 %v63, %v141
  %v164 = vmul.f32 %v64, %v143
  %v165 = vmul.f32 %v65, %v145
  %v166 = vsub.f32 1.0, %v46
  %v167 = vsub.f32 1.0, %v47
  %v168 = vsub.f32 1.0, %v48
  %v169 = vsub.f32 1.0, %v49
  %v170 = vsub.f32 1.0, %v50
  %v171 = vsub.f32 1.0, %v51
  %v172 = vsub.f32 1.0, %v52
  %v173 = vsub.f32 1.0, %v53
  %v174 = vsub.f32 1.0, %v54
  %v175 = vsub.f32 1.0, %v55
  %v176 = vsub.f32 1.0, %v56
  %v177 = vsub.f32 1.0, %v57
  %v178 = vsub.f32 1.0, %v58
  %v179 = vsub.f32 1.0, %v59
  %v180 = vsub.f32 1.0, %v60
  %v181 = vsub.f32 1.0, %v61
  %v182 = vsub.f32 1.0, %v62
  %v183 = vsub.f32 1.0, %v63
  %v184 = vsub.f32 1.0, %v64
  %v185 = vsub.f32 1.0, %v65
  %v186 = vsub.f32 1.0, %v86
  %v187 = vsub.f32 1.0, %v87
  %v188 = vsub.f32 1.0, %v88
  %v189 = vsub.f32 1.0, %v89
  %v190 = vsub.f32 1.0, %v90
  %v191 = vsub.f32 1.0, %v91
  %v192 = vsub.f32 1.0, %v92
  %v193 = vsub.f32 1.0, %v93
  %v194 = vsub.f32 1.0, %v94
  %v195 = vsub.f32 1.0, %v95
  %v196 = vsub.f32 1.0, %v96
  %v197 = vsub.f32 1.0, %v97
  %v198 = vsub.f32 1.0, %v98
  %v199 = vsub.f32 1.0, %v99
  %v200 = vsub.f32 1.0, %v100
  %v201 = vsub.f32 1.0, %v101
  %v202 = vsub.f32 1.0, %v102
  %v203 = vsub.f32 1.0, %v103
  %v204 = vsub.f32 1.0, %v104
  %v205 = vsub.f32 1.0, %v105
  %v206 = vlog2.pop %v186
  %v207 = vmul.f32 %v206, 0.6931472
  %v208 = vlog2.pop %v187
  %v209 = vmul.f32 %v208, 0.6931472
  %v210 = vlog2.pop %v188
  %v211 = vmul.f32 %v210, 0.6931472
  %v212 = vlog2.pop %v189
  %v213 = vmul.f32 %v212, 0.6931472
  %v214 = vlog2.pop %v190
  %v215 = vmul.f32 %v214, 0.6931472
  %v216 = vlog2.pop %v191
  %v217 = vmul.f32 %v216, 0.6931472
  %v218 = vlog2.pop %v192
  %v219 = vmul.f32 %v218, 0.6931472
  %v220 = vlog2.pop %v193
  %v221 = vmul.f32 %v220, 0.6931472
  %v222 = vlog2.pop %v194
  %v223 = vmul.f32 %v222, 0.6931472
  %v224 = vlog2.pop %v195
  %v225 = vmul.f32 %v224, 0.6931472
  %v226 = vlog2.pop %v196
  %v227 = vmul.f32 %v226, 0.6931472
  %v228 = vlog2.pop %v197
  %v229 = vmul.f32 %v228, 0.6931472
  %v230 = vlog2.pop %v198
  %v231 = vmul.f32 %v230, 0.6931472
  %v232 = vlog2.pop %v199
  %v233 = vmul.f32 %v232, 0.6931472
  %v234 = vlog2.pop %v200
  %v235 = vmul.f32 %v234, 0.6931472
  %v236 = vlog2.pop %v201
  %v237 = vmul.f32 %v236, 0.6931472
  %v238 = vlog2.pop %v202
  %v239 = vmul.f32 %v238, 0.6931472
  %v240 = vlog2.pop %v203
  %v241 = vmul.f32 %v240, 0.6931472
  %v242 = vlog2.pop %v204
  %v243 = vmul.f32 %v242, 0.6931472
  %v244 = vlog2.pop %v205
  %v245 = vmul.f32 %v244, 0.6931472
  %v246 = vmul.f32 %v166, %v207
  %v247 = vmul.f32 %v167, %v209
  %v248 = vmul.f32 %v168, %v211
  %v249 = vmul.f32 %v169, %v213
  %v250 = vmul.f32 %v170, %v215
  %v251 = vmul.f32 %v171, %v217
  %v252 = vmul.f32 %v172, %v219
  %v253 = vmul.f32 %v173, %v221
  %v254 = vmul.f32 %v174, %v223
  %v255 = vmul.f32 %v175, %v225
  %v256 = vmul.f32 %v176, %v227
  %v257 = vmul.f32 %v177, %v229
  %v258 = vmul.f32 %v178, %v231
  %v259 = vmul.f32 %v179, %v233
  %v260 = vmul.f32 %v180, %v235
  %v261 = vmul.f32 %v181, %v237
  %v262 = vmul.f32 %v182, %v239
  %v263 = vmul.f32 %v183, %v241
  %v264 = vmul.f32 %v184, %v243
  %v265 = vmul.f32 %v185, %v245
  %v266 = vadd.f32 %v146, %v246
  %v267 = vadd.f32 %v147, %v247
  %v268 = vadd.f32 %v148, %v248
  %v269 = vadd.f32 %v149, %v249
  %v270 = vadd.f32 %v150, %v250
  %v271 = vadd.f32 %v151, %v251
  %v272 = vadd.f32 %v152, %v252
  %v273 = vadd.f32 %v153, %v253
  %v274 = vadd.f32 %v154, %v254
  %v275 = vadd.f32 %v155, %v255
  %v276 = vadd.f32 %v156, %v256
  %v277 = vadd.f32 %v157, %v257
  %v278 = vadd.f32 %v158, %v258
  %v279 = vadd.f32 %v159, %v259
  %v280 = vadd.f32 %v160, %v260
  %v281 = vadd.f32 %v161, %v261
  %v282 = vadd.f32 %v162, %v262
  %v283 = vadd.f32 %v163, %v263
  %v284 = vadd.f32 %v164, %v264
  %v285 = vadd.f32 %v165, %v265
  %v286 = vsub.f32 0.0, %v266
  %v287 = vsub.f32 0.0, %v267
  %v288 = vsub.f32 0.0, %v268
  %v289 = vsub.f32 0.0, %v269
  %v290 = vsub.f32 0.0, %v270
  %v291 = vsub.f32 0.0, %v271
  %v292 = vsub.f32 0.0, %v272
  %v293 = vsub.f32 0.0, %v273
  %v294 = vsub.f32 0.0, %v274
  %v295 = vsub.f32 0.0, %v275
  %v296 = vsub.f32 0.0, %v276
  %v297 = vsub.f32 0.0, %v277
  %v298 = vsub.f32 0.0, %v278
  %v299 = vsub.f32 0.0, %v279
  %v300 = vsub.f32 0.0, %v280
  %v301 = vsub.f32 0.0, %v281
  %v302 = vsub.f32 0.0, %v282
  %v303 = vsub.f32 0.0, %v283
  %v304 = vsub.f32 0.0, %v284
  %v305 = vsub.f32 0.0, %v285
  %vm306 = vcmask 1040384
  %v307 = vsel %vm306, %v286, 0.0
  %v308 = vsel %vm306, %v287, 0.0
  %v309 = vadd.f32 %v307, %v308
  %v310 = vsel %vm306, %v288, 0.0
  %v311 = vadd.f32 %v309, %v310
  %v312 = vsel %vm306, %v289, 0.0
  %v313 = vadd.f32 %v311, %v312
  %v314 = vsel %vm306, %v290, 0.0
  %v315 = vadd.f32 %v313, %v314
  %v316 = vsel %vm306, %v291, 0.0
  %v317 = vadd.f32 %v315, %v316
  %v318 = vsel %vm306, %v292, 0.0
  %v319 = vadd.f32 %v317, %v318
  %v320 = vsel %vm306, %v293, 0.0
  %v321 = vadd.f32 %v319, %v320
  %v322 = vsel %vm306, %v294, 0.0
  %v323 = vadd.f32 %v321, %v322
  %v324 = vsel %vm306, %v295, 0.0
  %v325 = vadd.f32 %v323, %v324
  %v326 = vsel %vm306, %v296, 0.0
  %v327 = vadd.f32 %v325, %v326
  %v328 = vsel %vm306, %v297, 0.0
  %v329 = vadd.f32 %v327, %v328
  %v330 = vsel %vm306, %v298, 0.0
  %v331 = vadd.f32 %v329, %v330
  %v332 = vsel %vm306, %v299, 0.0
  %v333 = vadd.f32 %v331, %v332
  %v334 = vsel %vm306, %v300, 0.0
  %v335 = vadd.f32 %v333, %v334
  %v336 = vsel %vm306, %v301, 0.0
  %v337 = vadd.f32 %v335, %v336
  %v338 = vsel %vm306, %v302, 0.0
  %v339 = vadd.f32 %v337, %v338
  %v340 = vsel %vm306, %v303, 0.0
  %v341 = vadd.f32 %v339, %v340
  %v342 = vsel %vm306, %v304, 0.0
  %v343 = vadd.f32 %v341, %v342
  %v344 = vsel %vm306, %v305, 0.0
  %v345 = vadd.f32 %v343, %v344
  %v346 = vmul.f32 %v345, %v9
  %v347 = vsel %vm306, %v346, 0.0
  %348 = vadd.xlane.f32.xlu0 %v347
  %v349 = vpop.xlane.xlu0 %348
  %v350 = vrot.slane %v349, 4
  %v351 = vadd.f32 %v349, %v350
  %v352 = vrot.slane %v351, 2
  %v353 = vadd.f32 %v351, %v352
  %v354 = vrot.slane %v353, 1
  %v355 = vadd.f32 %v353, %v354
  %s356 = vtos %v355
  %s357 = smul.f32 %s356, 0.5
  %s358 = scalar_lea.vmem %s0, 4
  %v359 = vld [vmem:[%s358] sm:$0x1]
  %v360 = vsub.f32 %v359, 0.05
  %v361 = vmul.f32 %v360, %v360
  %s362 = scalar_lea.vmem %s0, 9
  %v363 = vld [vmem:[%s362] sm:$0x1]
  %v364 = vsub.f32 %v363, 0.05
  %v365 = vmul.f32 %v364, %v364
  %v366 = vadd.f32 %v361, %v365
  %v367 = vmul.f32 %v366, %v23
  %v368 = vsel %vm306, %v367, 0.0
  %369 = vadd.xlane.f32.xlu0 %v368
  %v370 = vpop.xlane.xlu0 %369
  %v371 = vrot.slane %v370, 4
  %v372 = vadd.f32 %v370, %v371
  %v373 = vrot.slane %v372, 2
  %v374 = vadd.f32 %v372, %v373
  %v375 = vrot.slane %v374, 1
  %v376 = vadd.f32 %v374, %v375
  %s377 = vtos %v376
  %s378 = scalar_lea.vmem %s0, 30
  %v379 = vld [vmem:[%s378] sm:$0x1]
  %s380 = scalar_lea.vmem %s0, 31
  %v381 = vld [vmem:[%s380] sm:$0x1]
  %s382 = scalar_lea.vmem %s0, 32
  %v383 = vld [vmem:[%s382] sm:$0x1]
  %s384 = scalar_lea.vmem %s0, 33
  %v385 = vld [vmem:[%s384] sm:$0x1]
  %v386 = vrcp.pop 7.0
  %v387 = vmul.f32 7.0, %v386
  %v388 = vsub.f32 1.0, %v387
  %v389 = vmul.f32 %v386, %v388
  %v390 = vadd.f32 %v386, %v389
  %vm391 = vweird.f32 %v386
  %v392 = vsel %vm391, %v386, %v390
  %v393 = vmul.f32 %v379, %v392
  %v394 = vmul.f32 %v381, %v392
  %v395 = vmax.f32 %v383, 1e-10
  %v396 = vmax.f32 %v385, 1e-10
  %v397 = vmul.f32 %v395, 0.5
  %v398 = vsub.f32 %v393, %v397
  %v399 = vmax.f32 %v398, 0.0
  %v400 = vmin.f32 %v399, 1.0
  %v401 = vmul.f32 %v396, 0.5
  %v402 = vsub.f32 %v394, %v401
  %v403 = vmax.f32 %v402, 0.0
  %v404 = vmin.f32 %v403, 1.0
  %v405 = vadd.f32 %v393, %v397
  %v406 = vmax.f32 %v405, 0.0
  %v407 = vmin.f32 %v406, 1.0
  %v408 = vadd.f32 %v394, %v401
  %v409 = vmax.f32 %v408, 0.0
  %v410 = vmin.f32 %v409, 1.0
  %v411 = vsub.f32 %v407, %v400
  %v412 = vsub.f32 %v410, %v404
  %v413 = vmul.f32 %v411, %v412
  %v414 = vld [vmem:[%s0] sm:$0x1]
  %s415 = scalar_lea.vmem %s0, 1
  %v416 = vld [vmem:[%s415] sm:$0x1]
  %s417 = scalar_lea.vmem %s0, 2
  %v418 = vld [vmem:[%s417] sm:$0x1]
  %s419 = scalar_lea.vmem %s0, 3
  %v420 = vld [vmem:[%s419] sm:$0x1]
  %v421 = vmul.f32 %v414, %v392
  %v422 = vmul.f32 %v416, %v392
  %v423 = vmax.f32 %v418, 1e-10
  %v424 = vmax.f32 %v420, 1e-10
  %v425 = vmul.f32 %v423, 0.5
  %v426 = vsub.f32 %v421, %v425
  %v427 = vmax.f32 %v426, 0.0
  %v428 = vmin.f32 %v427, 1.0
  %v429 = vmul.f32 %v424, 0.5
  %v430 = vsub.f32 %v422, %v429
  %v431 = vmax.f32 %v430, 0.0
  %v432 = vmin.f32 %v431, 1.0
  %v433 = vadd.f32 %v421, %v425
  %v434 = vmax.f32 %v433, 0.0
  %v435 = vmin.f32 %v434, 1.0
  %v436 = vadd.f32 %v422, %v429
  %v437 = vmax.f32 %v436, 0.0
  %v438 = vmin.f32 %v437, 1.0
  %v439 = vsub.f32 %v435, %v428
  %v440 = vsub.f32 %v438, %v432
  %v441 = vmul.f32 %v439, %v440
  %v442 = vmin.f32 %v435, %v407
  %v443 = vmax.f32 %v428, %v400
  %v444 = vsub.f32 %v442, %v443
  %v445 = vmax.f32 %v444, 0.0
  %v446 = vmin.f32 %v438, %v410
  %v447 = vmax.f32 %v432, %v404
  %v448 = vsub.f32 %v446, %v447
  %v449 = vmax.f32 %v448, 0.0
  %v450 = vmul.f32 %v445, %v449
  %v451 = vadd.f32 %v441, %v413
  %v452 = vsub.f32 %v451, %v450
  %v453 = vadd.f32 %v452, 1e-10
  %v454 = vrcp.pop %v453
  %v455 = vmul.f32 %v453, %v454
  %v456 = vsub.f32 1.0, %v455
  %v457 = vmul.f32 %v454, %v456
  %v458 = vadd.f32 %v454, %v457
  %vm459 = vweird.f32 %v453
  %vm460 = vweird.f32 %v454
  %vm461 = vmor %vm459, %vm460
  %v462 = vsel %vm461, %v454, %v458
  %v463 = vand.u32 2147483647, %v453
  %vm464 = vcmp.eq.f32.partialorder %v463, 8.507059e+37
  %v465 = vand.u32 %v453, 2147483648
  %v466 = vor.u32 1.1754944e-38, %v465
  %v467 = vsel %vm464, %v466, %v462
  %v468 = vmul.f32 %v450, %v467
  %s469 = scalar_lea.vmem %s0, 5
  %v470 = vld [vmem:[%s469] sm:$0x1]
  %s471 = scalar_lea.vmem %s0, 6
  %v472 = vld [vmem:[%s471] sm:$0x1]
  %s473 = scalar_lea.vmem %s0, 7
  %v474 = vld [vmem:[%s473] sm:$0x1]
  %s475 = scalar_lea.vmem %s0, 8
  %v476 = vld [vmem:[%s475] sm:$0x1]
  %v477 = vmul.f32 %v470, %v392
  %v478 = vmul.f32 %v472, %v392
  %v479 = vmax.f32 %v474, 1e-10
  %v480 = vmax.f32 %v476, 1e-10
  %v481 = vmul.f32 %v479, 0.5
  %v482 = vsub.f32 %v477, %v481
  %v483 = vmax.f32 %v482, 0.0
  %v484 = vmin.f32 %v483, 1.0
  %v485 = vmul.f32 %v480, 0.5
  %v486 = vsub.f32 %v478, %v485
  %v487 = vmax.f32 %v486, 0.0
  %v488 = vmin.f32 %v487, 1.0
  %v489 = vadd.f32 %v477, %v481
  %v490 = vmax.f32 %v489, 0.0
  %v491 = vmin.f32 %v490, 1.0
  %v492 = vadd.f32 %v478, %v485
  %v493 = vmax.f32 %v492, 0.0
  %v494 = vmin.f32 %v493, 1.0
  %v495 = vsub.f32 %v491, %v484
  %v496 = vsub.f32 %v494, %v488
  %v497 = vmul.f32 %v495, %v496
  %v498 = vmin.f32 %v491, %v407
  %v499 = vmax.f32 %v484, %v400
  %v500 = vsub.f32 %v498, %v499
  %v501 = vmax.f32 %v500, 0.0
  %v502 = vmin.f32 %v494, %v410
  %v503 = vmax.f32 %v488, %v404
  %v504 = vsub.f32 %v502, %v503
  %v505 = vmax.f32 %v504, 0.0
  %v506 = vmul.f32 %v501, %v505
  %v507 = vadd.f32 %v497, %v413
  %v508 = vsub.f32 %v507, %v506
  %v509 = vadd.f32 %v508, 1e-10
  %v510 = vrcp.pop %v509
  %v511 = vmul.f32 %v509, %v510
  %v512 = vsub.f32 1.0, %v511
  %v513 = vmul.f32 %v510, %v512
  %v514 = vadd.f32 %v510, %v513
  %vm515 = vweird.f32 %v509
  %vm516 = vweird.f32 %v510
  %vm517 = vmor %vm515, %vm516
  %v518 = vsel %vm517, %v510, %v514
  %v519 = vand.u32 2147483647, %v509
  %vm520 = vcmp.eq.f32.partialorder %v519, 8.507059e+37
  %v521 = vand.u32 %v509, 2147483648
  %v522 = vor.u32 1.1754944e-38, %v521
  %v523 = vsel %vm520, %v522, %v518
  %v524 = vmul.f32 %v506, %v523
  %vm525 = vcmp.gt.f32.partialorder %v524, %v468
  %v526 = vsel %vm525, %v524, %v468
  %v527 = vsel %vm525, %v470, %v414
  %v528 = vsel %vm525, %v472, %v416
  %v529 = vsel %vm525, %v474, %v418
  %v530 = vsel %vm525, %v476, %v420
  %v531 = vsel %vm525, %v363, %v359
  %v532 = vadd.f32 %v526, 0.5
  %v533 = vmin.f32 %v532, 0.95
  %v534 = vand.u32 2147483647, %v529
  %v535 = vadd.f32 %v534, 1e-06
  %v536 = vand.u32 2147483647, %v530
  %v537 = vadd.f32 %v536, 1e-06
  %v538 = vand.u32 2147483647, %v383
  %v539 = vadd.f32 %v538, 1e-06
  %v540 = vand.u32 2147483647, %v385
  %v541 = vadd.f32 %v540, 1e-06
  %v542 = vsub.f32 %v527, %v379
  %v543 = vmul.f32 %v542, %v542
  %v544 = vsub.f32 %v528, %v381
  %v545 = vmul.f32 %v544, %v544
  %v546 = vadd.f32 %v543, %v545
  %v547 = vadd.f32 %v546, %v535
  %v548 = vadd.f32 %v547, %v539
  %v549 = vmul.f32 %v535, %v539
  %v550 = vrsqrt.pop %v549
  %v551 = vmul.f32 %v550, %v549
  %v552 = vmul.f32 %v551, %v550
  %v553 = vmul.f32 0.5, %v552
  %v554 = vsub.f32 1.5, %v553
  %v555 = vmul.f32 %v550, %v554
  %v556 = vmul.f32 %v549, %v555
  %vm557 = vcmp.eq.f32.partialorder %v549, inf
  %v558 = vsel %vm557, %v549, %v556
  %vm559 = vcmp.eq.f32.partialorder %v549, 0.0
  %v560 = vand.u32 %v549, 2147483648
  %v561 = vsel %vm559, %v560, %v558
  %v562 = vmul.f32 %v561, 2.0
  %v563 = vsub.f32 %v548, %v562
  %v564 = vadd.f32 %v563, %v537
  %v565 = vadd.f32 %v564, %v541
  %v566 = vmul.f32 %v537, %v541
  %v567 = vrsqrt.pop %v566
  %v568 = vmul.f32 %v567, %v566
  %v569 = vmul.f32 %v568, %v567
  %v570 = vmul.f32 0.5, %v569
  %v571 = vsub.f32 1.5, %v570
  %v572 = vmul.f32 %v567, %v571
  %v573 = vmul.f32 %v566, %v572
  %vm574 = vcmp.eq.f32.partialorder %v566, inf
  %v575 = vsel %vm574, %v566, %v573
  %vm576 = vcmp.eq.f32.partialorder %v566, 0.0
  %v577 = vand.u32 %v566, 2147483648
  %v578 = vsel %vm576, %v577, %v575
  %v579 = vmul.f32 %v578, 2.0
  %v580 = vsub.f32 %v565, %v579
  %v581 = vmul.f32 %v580, %v9
  %v582 = vsel %vm306, %v581, 0.0
  %583 = vadd.xlane.f32.xlu0 %v582
  %v584 = vpop.xlane.xlu0 %583
  %v585 = vrot.slane %v584, 4
  %v586 = vadd.f32 %v584, %v585
  %v587 = vrot.slane %v586, 2
  %v588 = vadd.f32 %v586, %v587
  %v589 = vrot.slane %v588, 1
  %v590 = vadd.f32 %v588, %v589
  %s591 = vtos %v590
  %s592 = smul.f32 %s591, 2.0
  %v593 = vsub.f32 %v531, %v533
  %v594 = vmul.f32 %v593, %v593
  %v595 = vmul.f32 %v594, %v9
  %v596 = vsel %vm306, %v595, 0.0
  %597 = vadd.xlane.f32.xlu0 %v596
  %v598 = vpop.xlane.xlu0 %597
  %v599 = vrot.slane %v598, 4
  %v600 = vadd.f32 %v598, %v599
  %v601 = vrot.slane %v600, 2
  %v602 = vadd.f32 %v600, %v601
  %v603 = vrot.slane %v602, 1
  %v604 = vadd.f32 %v602, %v603
  %s605 = vtos %v604
  %s606 = smul.f32 %s605, 10.0
  %v607 = vsel %vm306, %v9, 0.0
  %608 = vadd.xlane.f32.xlu0 %v607
  %v609 = vpop.xlane.xlu0 %608
  %v610 = vrot.slane %v609, 4
  %v611 = vadd.f32 %v609, %v610
  %v612 = vrot.slane %v611, 2
  %v613 = vadd.f32 %v611, %v612
  %v614 = vrot.slane %v613, 1
  %v615 = vadd.f32 %v613, %v614
  %s616 = vtos %v615
  %vm617 = vcmp.eq.s32.totalorder %v11, 0
  %v618 = vstv %s357
  %v619 = vsel %vm617, %v618, 0.0
  %vm620 = vcmp.eq.s32.totalorder %v11, 1
  %v621 = vstv %s377
  %v622 = vsel %vm620, %v621, 0.0
  %v623 = vadd.f32 %v619, %v622
  %vm624 = vcmp.eq.s32.totalorder %v11, 2
  %v625 = vstv %s592
  %v626 = vsel %vm624, %v625, 0.0
  %v627 = vadd.f32 %v623, %v626
  %vm628 = vcmp.eq.s32.totalorder %v11, 3
  %v629 = vstv %s606
  %v630 = vsel %vm628, %v629, 0.0
  %v631 = vadd.f32 %v627, %v630
  %vm632 = vcmp.eq.s32.totalorder %v11, 4
  %v633 = vstv %s616
  %v634 = vsel %vm632, %v633, 0.0
  %v635 = vadd.f32 %v631, %v634
  %636 = vst [vmem:[%s1] sm:$0xff] %v635
  // Predicated region
  $region6: #{yolo_loss.1} parent=0 // pred_check
    _
  $region7: #{yolo_loss.1} parent=0 // pred_check_branch
    %638 = sbr.rel (0) target = $region9
  $region8: #{yolo_loss.1} parent=0 // pred_region
    _
  $region9: #{yolo_loss.1} parent=0 // pred_fallthru
    _
  // Predicated region
  $region10: #{yolo_loss.1} parent=0 // pred_check
    _
  $region11: #{yolo_loss.1} parent=0 // pred_check_branch
    %640 = sbr.rel (0) target = $region13
  $region12: #{yolo_loss.1} parent=0 // pred_region
    _
  $region13: #{yolo_loss.1} parent=0 // pred_fallthru
    _

</llo_original>
